<compile_context>
chip_gen: v5e
topology: v5e:2x2
jax: 0.10.0
libtpu: 0.0.40
codegen_flags: <defaults>
</compile_context>

<pallas_src>
import functools

import jax
import jax.numpy as jnp
from jax.experimental import pallas as pl
from jax.experimental.pallas import tpu as pltpu


def _dice_partials_kernel(x_ref, t_ref, inter_out, union_out, inter_acc, union_acc,
                          *, n_valid, tile_n, chunk, needs_mask):
    # x_ref:     (C, TILE_N) logits tile (classes on sublanes, batch on lanes)
    # t_ref:     (1, TILE_N) integer target class ids (int8/int16/int32)
    # inter_out: (C, 1) per-slice partial intersection   (leading slice dim squeezed)
    # union_out: (C, 1) per-slice partial union
    # *_acc:     (C, 1) f32 VMEM accumulators carried across the tile axis
    s = pl.program_id(0)                 # slice (parallel axis; one per TC on v7x)
    i = pl.program_id(1)                 # tile within slice (reduction axis)
    tiles_per_slice = pl.num_programs(1)

    @pl.when(i == 0)
    def _():
        inter_acc[...] = jnp.zeros_like(inter_acc)
        union_acc[...] = jnp.zeros_like(union_acc)

    c = x_ref.shape[0]
    n_chunks = tile_n // chunk           # static
    tile_base = (s * tiles_per_slice + i) * tile_n

    def body(j, carry):
        inter_p, union_p = carry
        off = pl.multiple_of(j * chunk, chunk)
        # bf16 logits / int8 targets from HBM are fine; widen in-kernel after the DMA
        x = x_ref[:, pl.ds(off, chunk)].astype(jnp.float32)    # (C, chunk)
        t = t_ref[:, pl.ds(off, chunk)].astype(jnp.int32)      # (1, chunk)

        # numerically stable softmax over the class (sublane) axis
        m = jnp.max(x, axis=0, keepdims=True)                  # (1, chunk)
        e = jnp.exp(x - m)                                      # EUP
        denom = jnp.sum(e, axis=0, keepdims=True)               # (1, chunk)
        p = e * pl.reciprocal(denom, approx=True)                # EUP slot, ~1e-4 rel

        # one-hot via sublane iota compare
        cls = jax.lax.broadcasted_iota(jnp.int32, (c, chunk), 0)
        hit = cls == t                                          # (C, chunk) bool

        if needs_mask:
            # select (not multiply) BEFORE accumulation: out-of-bounds lanes of the
            # partial last block are undefined and may be Inf/NaN.
            col = jax.lax.broadcasted_iota(jnp.int32, (1, chunk), 1) + (tile_base + off)
            valid = col < n_valid                               # (1, chunk) bool
            p = jnp.where(valid, p, 0.0)
            hit = jnp.logical_and(hit, valid)

        onehot = hit.astype(jnp.float32)
        inter_p = inter_p + jnp.sum(p * onehot, axis=1, keepdims=True)   # (C, 1)
        union_p = union_p + jnp.sum(p + onehot, axis=1, keepdims=True)   # (C, 1)
        return inter_p, union_p

    zero = jnp.zeros((c, 1), jnp.float32)
    inter_p, union_p = jax.lax.fori_loop(0, n_chunks, body, (zero, zero))

    inter_acc[...] += inter_p
    union_acc[...] += union_p

    @pl.when(i == tiles_per_slice - 1)
    def _():
        inter_out[...] = inter_acc[...]
        union_out[...] = union_acc[...]


def dice_loss(logits, targets, smooth=1e-6, num_classes=None,
              tile_n=None, num_slices=None, class_major=False):
    """Dice loss matching PyTorch DiceLoss.forward.

    logits:  (N, C) float32/bfloat16 (or (C, N) when class_major=True)
    targets: (N,) integer class ids (int8 recommended to cut HBM bytes)
    """
    if class_major:
        x = logits
        c, n = x.shape
    else:
        n, c = logits.shape
        x = jnp.transpose(logits)        # (C, N); see TODO about avoiding this pass
    if num_classes is not None:
        assert c == num_classes, "num_classes must match logits' class dim"

    t = targets.reshape(1, n)            # keep caller dtype (int8 -> 4x fewer bytes)

    CHUNK = 1024
    if tile_n is None:
        itemsize = jnp.dtype(x.dtype).itemsize
        # ~4 MiB of logits per block amortises the ~0.35us/step cost even at v7x BW.
        desired = max(CHUNK, (4 * 1024 * 1024) // (c * itemsize) // CHUNK * CHUNK)
        n_cap = max(128, (n // 128) * 128)       # don't exceed the (aligned) problem
        tile_n = min(desired, n_cap)
        if tile_n >= CHUNK:
            tile_n = (tile_n // CHUNK) * CHUNK
    assert tile_n % 128 == 0, "tile_n must be a multiple of the 128-lane width"
    chunk = CHUNK if tile_n % CHUNK == 0 else 128
    assert tile_n % chunk == 0

    n_tiles = pl.cdiv(n, tile_n)
    if num_slices is None:
        num_slices = 2                   # one slice per TensorCore on v7x
    if n_tiles % num_slices != 0:
        num_slices = 1                   # keep the grid exact; fall back to 1 slice
    tiles_per_slice = n_tiles // num_slices

    kernel = functools.partial(
        _dice_partials_kernel,
        n_valid=n, tile_n=tile_n, chunk=chunk,
        needs_mask=(n % tile_n != 0),
    )

    in_map = lambda s, i, T=tiles_per_slice: (0, s * T + i)

    inter_parts, union_parts = pl.pallas_call(
        kernel,
        out_shape=(jax.ShapeDtypeStruct((num_slices, c, 1), jnp.float32),
                   jax.ShapeDtypeStruct((num_slices, c, 1), jnp.float32)),
        grid_spec=pltpu.PrefetchScalarGridSpec(
            num_scalar_prefetch=0,
            grid=(num_slices, tiles_per_slice),
            in_specs=[
                pl.BlockSpec((c, tile_n), in_map),     # logits (C, N) tiles
                pl.BlockSpec((1, tile_n), in_map),     # targets (1, N) tiles
            ],
            out_specs=[
                pl.BlockSpec((None, c, 1), lambda s, i: (s, 0, 0)),
                pl.BlockSpec((None, c, 1), lambda s, i: (s, 0, 0)),
            ],
            scratch_shapes=[
                pltpu.VMEM((c, 1), jnp.float32),   # sum_N p * onehot (intersection)
                pltpu.VMEM((c, 1), jnp.float32),   # sum_N (p + onehot) (union)
            ],
        ),
        compiler_params=pltpu.CompilerParams(
            # slice axis writes disjoint partial outputs -> "parallel" (2 TCs on v7x);
            # tile axis carries the accumulators -> must stay "arbitrary".
            dimension_semantics=("parallel", "arbitrary"),
            # v5e scoped-VMEM default is only 16 MiB; 32 MiB covers the double-buffered
            # 4 MiB blocks with margin and fits every generation (incl. v7x 64 MiB).
            vmem_limit_bytes=32 * 1024 * 1024,
        ),
    )(x, t)

    # Tiny per-slice combine (a few dozen scalars) in plain JAX.
    inter = jnp.sum(inter_parts[:, :, 0], axis=0)    # (C,)
    union = jnp.sum(union_parts[:, :, 0], axis=0)    # (C,)
    dice = (2.0 * inter + smooth) / (union + smooth)
    return 1.0 - jnp.mean(dice)


def _reference_dice_loss(logits, targets, smooth, num_classes):
    # pure-JAX mirror of the PyTorch DiceLoss forward
    p = jax.nn.softmax(logits.astype(jnp.float32), axis=1)
    onehot = jax.nn.one_hot(targets.astype(jnp.int32), num_classes, dtype=jnp.float32)
    intersection = jnp.sum(p * onehot, axis=0)
    union = jnp.sum(p, axis=0) + jnp.sum(onehot, axis=0)
    dice = (2.0 * intersection + smooth) / (union + smooth)
    return 1.0 - jnp.mean(dice)


if __name__ == "__main__":
    key = jax.random.PRNGKey(0)
    k1, k2, k3, k4 = jax.random.split(key, 4)
    C = 4

    # Case A: 200 flattened samples (e.g. 2 images of 10x10 pixels), explicit tile_n=128
    # -> grid (2 slices x 1 tile): exercises the parallel slice split, accumulator
    # init/finalize, and tail-lane masking of the partial last block.
    N_A = 200
    logits_a = jax.random.normal(k1, (N_A, C), dtype=jnp.float32)
    targets_a = jax.random.randint(k2, (N_A,), 0, C, dtype=jnp.int32).astype(jnp.int8)
    loss_a = jax.block_until_ready(dice_loss(logits_a, targets_a, 1e-6, C, tile_n=128))
    ref_a = _reference_dice_loss(logits_a, targets_a, 1e-6, C)
    assert jnp.allclose(loss_a, ref_a, rtol=5e-3, atol=5e-3), (loss_a, ref_a)

    # Case B: 2x40x40 flattened pixels, default (large-tile) path: in-kernel 1024-lane
    # chunk loop, 2 slices, partial last block masked in-kernel (no jnp.pad pass).
    N_B = 2 * 40 * 40
    logits_b = jax.random.normal(k3, (N_B, C), dtype=jnp.float32)
    targets_b = jax.random.randint(k4, (N_B,), 0, C, dtype=jnp.int32).astype(jnp.int8)
    loss_b = jax.block_until_ready(dice_loss(logits_b, targets_b, 1e-6, C))
    ref_b = _reference_dice_loss(logits_b, targets_b, 1e-6, C)
    assert jnp.allclose(loss_b, ref_b, rtol=5e-3, atol=5e-3), (loss_b, ref_b)

    print("KERNEL_OK")
</pallas_src>

<mosaic_0001>
module attributes {stable_mosaic.version = 11 : i64} {
  func.func @_dice_partials_kernel(%arg0: i32, %arg1: i32, %arg2: memref<4x128xf32, #tpu.memory_space<vmem>>, %arg3: memref<1x128xi8, #tpu.memory_space<vmem>>, %arg4: memref<1x4x1xf32, #tpu.memory_space<vmem>>, %arg5: memref<1x4x1xf32, #tpu.memory_space<vmem>>, %arg6: memref<4x1xf32, #tpu.memory_space<vmem>>, %arg7: memref<4x1xf32, #tpu.memory_space<vmem>>) attributes {dimension_semantics = [#tpu.dimension_semantics<parallel>, #tpu.dimension_semantics<arbitrary>], iteration_bounds = array<i64: 2, 1>, scalar_prefetch = 0 : i64, scratch_operands = 2 : i64, tpu.core_type = #tpu.core_type<tc>, window_params = [{transform_indices = @transform_0, window_bounds = array<i64: 4, 128>}, {transform_indices = @transform_1, window_bounds = array<i64: 1, 128>}, {transform_indices = @transform_2, window_bounds = array<i64: 1, 4, 1>}, {transform_indices = @transform_3, window_bounds = array<i64: 1, 4, 1>}]} {
    %c0_i32 = arith.constant 0 : i32
    %0 = arith.cmpi eq, %arg1, %c0_i32 : i32
    %1 = arith.extui %0 : i1 to i32
    %c0_i32_0 = arith.constant 0 : i32
    %2 = arith.cmpi ne, %1, %c0_i32_0 : i32
    scf.if %2 {
      %cst_20 = arith.constant 0.000000e+00 : f32
      %58 = vector.broadcast %cst_20 : f32 to vector<4x1xf32>
      %c0_21 = arith.constant 0 : index
      %c0_22 = arith.constant 0 : index
      %59 = vector.load %arg6[%c0_21, %c0_22] : memref<4x1xf32, #tpu.memory_space<vmem>>, vector<4x1xf32>
      tpu.vector_store %arg6[%c0_21, %c0_22], %58 {strides = array<i32>} : memref<4x1xf32, #tpu.memory_space<vmem>>, vector<4x1xf32>,
      %cst_23 = arith.constant 0.000000e+00 : f32
      %60 = vector.broadcast %cst_23 : f32 to vector<4x1xf32>
      %c0_24 = arith.constant 0 : index
      %c0_25 = arith.constant 0 : index
      %61 = vector.load %arg7[%c0_24, %c0_25] : memref<4x1xf32, #tpu.memory_space<vmem>>, vector<4x1xf32>
      tpu.vector_store %arg7[%c0_24, %c0_25], %60 {strides = array<i32>} : memref<4x1xf32, #tpu.memory_space<vmem>>, vector<4x1xf32>,
    } else {
    }
    %c1_i32 = arith.constant 1 : i32
    %3 = arith.muli %arg0, %c1_i32 : i32
    %4 = arith.addi %3, %arg1 : i32
    %c128_i32 = arith.constant 128 : i32
    %5 = arith.muli %4, %c128_i32 : i32
    %cst = arith.constant 0.000000e+00 : f32
    %6 = vector.broadcast %cst : f32 to vector<4x1xf32>
    %c0_i32_1 = arith.constant 0 : i32
    %c128_i32_2 = arith.constant 128 : i32
    %7 = arith.muli %c0_i32_1, %c128_i32_2 : i32
    %8 = tpu.assume_multiple %7, 128 : i32
    %c0 = arith.constant 0 : index
    %9 = arith.index_cast %8 : i32 to index
    %10 = vector.load %arg2[%c0, %9] : memref<4x128xf32, #tpu.memory_space<vmem>>, vector<4x128xf32>
    %c0_3 = arith.constant 0 : index
    %11 = arith.index_cast %8 : i32 to index
    %12 = vector.load %arg3[%c0_3, %11] : memref<1x128xi8, #tpu.memory_space<vmem>>, vector<1x128xi8>
    %13 = arith.extsi %12 : vector<1x128xi8> to vector<1x128xi32>
    %cst_4 = arith.constant dense<0xFF800000> : vector<128xf32>
    %14 = vector.multi_reduction <maximumf>, %10, %cst_4 [0] : vector<4x128xf32> to vector<128xf32>
    %15 = vector.shape_cast %14 : vector<128xf32> to vector<1x128xf32>
    %16 = vector.broadcast %15 : vector<1x128xf32> to vector<4x128xf32>
    %17 = arith.subf %10, %16 : vector<4x128xf32>
    %18 = math.exp %17 : vector<4x128xf32>
    %cst_5 = arith.constant dense<0.000000e+00> : vector<128xf32>
    %19 = vector.multi_reduction <add>, %18, %cst_5 [0] : vector<4x128xf32> to vector<128xf32>
    %20 = vector.shape_cast %19 : vector<128xf32> to vector<1x128xf32>
    %21 = tpu.reciprocal %20 {approx = true} : vector<1x128xf32> -> vector<1x128xf32>
    %22 = vector.broadcast %21 : vector<1x128xf32> to vector<4x128xf32>
    %23 = arith.mulf %18, %22 : vector<4x128xf32>
    %24 = tpu.iota {dimensions = array<i32: 0>} : vector<4x128xi32>
    %25 = vector.broadcast %13 : vector<1x128xi32> to vector<4x128xi32>
    %26 = arith.cmpi eq, %24, %25 : vector<4x128xi32>
    %27 = tpu.iota {dimensions = array<i32: 1>} : vector<1x128xi32>
    %28 = arith.addi %5, %8 : i32
    %29 = vector.broadcast %28 : i32 to vector<1x128xi32>
    %30 = arith.addi %27, %29 : vector<1x128xi32>
    %c200_i32 = arith.constant 200 : i32
    %31 = vector.broadcast %c200_i32 : i32 to vector<1x128xi32>
    %32 = arith.cmpi slt, %30, %31 : vector<1x128xi32>
    %cst_6 = arith.constant 0.000000e+00 : f32
    %33 = vector.shape_cast %32 : vector<1x128xi1> to vector<1x128xi1>
    %34 = vector.broadcast %33 : vector<1x128xi1> to vector<4x128xi1>
    %35 = vector.broadcast %cst_6 : f32 to vector<4x128xf32>
    %36 = arith.select %34, %23, %35 : vector<4x128xi1>, vector<4x128xf32>
    %37 = vector.broadcast %32 : vector<1x128xi1> to vector<4x128xi1>
    %38 = arith.andi %26, %37 : vector<4x128xi1>
    %39 = arith.extui %38 : vector<4x128xi1> to vector<4x128xi32>
    %40 = arith.sitofp %39 : vector<4x128xi32> to vector<4x128xf32>
    %41 = arith.mulf %36, %40 : vector<4x128xf32>
    %cst_7 = arith.constant dense<0.000000e+00> : vector<4xf32>
    %42 = vector.multi_reduction <add>, %41, %cst_7 [1] : vector<4x128xf32> to vector<4xf32>
    %43 = vector.shape_cast %42 : vector<4xf32> to vector<4x1xf32>
    %44 = arith.addf %6, %43 : vector<4x1xf32>
    %45 = arith.addf %36, %40 : vector<4x128xf32>
    %cst_8 = arith.constant dense<0.000000e+00> : vector<4xf32>
    %46 = vector.multi_reduction <add>, %45, %cst_8 [1] : vector<4x128xf32> to vector<4xf32>
    %47 = vector.shape_cast %46 : vector<4xf32> to vector<4x1xf32>
    %48 = arith.addf %6, %47 : vector<4x1xf32>
    %c1_i32_9 = arith.constant 1 : i32
    %c0_10 = arith.constant 0 : index
    %c0_11 = arith.constant 0 : index
    %49 = vector.load %arg6[%c0_10, %c0_11] : memref<4x1xf32, #tpu.memory_space<vmem>>, vector<4x1xf32>
    %50 = arith.addf %49, %44 : vector<4x1xf32>
    %c0_12 = arith.constant 0 : index
    %c0_13 = arith.constant 0 : index
    %51 = vector.load %arg6[%c0_12, %c0_13] : memref<4x1xf32, #tpu.memory_space<vmem>>, vector<4x1xf32>
    tpu.vector_store %arg6[%c0_12, %c0_13], %50 {strides = array<i32>} : memref<4x1xf32, #tpu.memory_space<vmem>>, vector<4x1xf32>,
    %c0_14 = arith.constant 0 : index
    %c0_15 = arith.constant 0 : index
    %52 = vector.load %arg7[%c0_14, %c0_15] : memref<4x1xf32, #tpu.memory_space<vmem>>, vector<4x1xf32>
    %53 = arith.addf %52, %48 : vector<4x1xf32>
    %c0_16 = arith.constant 0 : index
    %c0_17 = arith.constant 0 : index
    %54 = vector.load %arg7[%c0_16, %c0_17] : memref<4x1xf32, #tpu.memory_space<vmem>>, vector<4x1xf32>
    tpu.vector_store %arg7[%c0_16, %c0_17], %53 {strides = array<i32>} : memref<4x1xf32, #tpu.memory_space<vmem>>, vector<4x1xf32>,
    %c0_i32_18 = arith.constant 0 : i32
    %55 = arith.cmpi eq, %arg1, %c0_i32_18 : i32
    %56 = arith.extui %55 : i1 to i32
    %c0_i32_19 = arith.constant 0 : i32
    %57 = arith.cmpi ne, %56, %c0_i32_19 : i32
    scf.if %57 {
      %c0_20 = arith.constant 0 : index
      %c0_21 = arith.constant 0 : index
      %58 = vector.load %arg6[%c0_20, %c0_21] : memref<4x1xf32, #tpu.memory_space<vmem>>, vector<4x1xf32>
      %c0_22 = arith.constant 0 : index
      %c0_23 = arith.constant 0 : index
      %c0_24 = arith.constant 0 : index
      %59 = vector.load %arg4[%c0_22, %c0_23, %c0_24] : memref<1x4x1xf32, #tpu.memory_space<vmem>>, vector<1x4x1xf32>
      %60 = vector.shape_cast %59 : vector<1x4x1xf32> to vector<4x1xf32>
      %61 = vector.shape_cast %58 : vector<4x1xf32> to vector<1x4x1xf32>
      tpu.vector_store %arg4[%c0_22, %c0_23, %c0_24], %61 {strides = array<i32>} : memref<1x4x1xf32, #tpu.memory_space<vmem>>, vector<1x4x1xf32>,
      %c0_25 = arith.constant 0 : index
      %c0_26 = arith.constant 0 : index
      %62 = vector.load %arg7[%c0_25, %c0_26] : memref<4x1xf32, #tpu.memory_space<vmem>>, vector<4x1xf32>
      %c0_27 = arith.constant 0 : index
      %c0_28 = arith.constant 0 : index
      %c0_29 = arith.constant 0 : index
      %63 = vector.load %arg5[%c0_27, %c0_28, %c0_29] : memref<1x4x1xf32, #tpu.memory_space<vmem>>, vector<1x4x1xf32>
      %64 = vector.shape_cast %63 : vector<1x4x1xf32> to vector<4x1xf32>
      %65 = vector.shape_cast %62 : vector<4x1xf32> to vector<1x4x1xf32>
      tpu.vector_store %arg5[%c0_27, %c0_28, %c0_29], %65 {strides = array<i32>} : memref<1x4x1xf32, #tpu.memory_space<vmem>>, vector<1x4x1xf32>,
    } else {
    }
    return
  }
  func.func @transform_0(%arg0: i32, %arg1: i32) -> (i32, i32) {
    %c1_i32 = arith.constant 1 : i32
    %0 = arith.muli %arg0, %c1_i32 : i32
    %1 = arith.addi %0, %arg1 : i32
    %c0_i32 = arith.constant 0 : i32
    %c0_i32_0 = arith.constant 0 : i32
    return %c0_i32, %1 : i32, i32
  }
  func.func @transform_1(%arg0: i32, %arg1: i32) -> (i32, i32) {
    %c1_i32 = arith.constant 1 : i32
    %0 = arith.muli %arg0, %c1_i32 : i32
    %1 = arith.addi %0, %arg1 : i32
    %c0_i32 = arith.constant 0 : i32
    %c0_i32_0 = arith.constant 0 : i32
    return %c0_i32, %1 : i32, i32
  }
  func.func @transform_2(%arg0: i32, %arg1: i32) -> (i32, i32, i32) {
    %c0_i32 = arith.constant 0 : i32
    %c0_i32_0 = arith.constant 0 : i32
    %c0_i32_1 = arith.constant 0 : i32
    return %arg0, %c0_i32, %c0_i32_0 : i32, i32, i32
  }
  func.func @transform_3(%arg0: i32, %arg1: i32) -> (i32, i32, i32) {
    %c0_i32 = arith.constant 0 : i32
    %c0_i32_0 = arith.constant 0 : i32
    %c0_i32_1 = arith.constant 0 : i32
    return %arg0, %c0_i32, %c0_i32_0 : i32, i32, i32
  }
}

</mosaic_0001>

<llo_original>
// kernel: tpu_custom_call.1
$region0: #{tpu_custom_call.1}
  #allocation0 [shape = 'u32[]', space=smem, size = 0x4, offset = 0x4, fixed_abs, tag = 'smem constant byte address 0x4 - core index']
  #allocation1 [shape = 'u32[72,128]{1,0:T(1,128)}', space=vmem, size = 0x9000, scoped, tag = 'internal scratch']
  #allocation2 [shape = 'f32[4,1]{1,0:T(4,128)}', space=vmem, size = 0x800, scoped, tag = 'scratch operand']
  #allocation3 [shape = 'f32[4,1]{1,0:T(4,128)}', space=vmem, size = 0x800, scoped, tag = 'scratch operand']
  %s0 = inlined_call_operand.hbm [shape: f32[4,200], index: 0, kind: input, shape index: {}]
  %s1 = inlined_call_operand.hbm [shape: s8[1,200], index: 1, kind: input, shape index: {}]
  %s2 = inlined_call_operand.vmem [shape: f32[2,4,1], index: 2, kind: output, shape index: {0}]
  %s3 = inlined_call_operand.vmem [shape: f32[2,4,1], index: 3, kind: output, shape index: {1}]
  %4 = xla_tuple %s2, %s3
  %s5 = sld [smem:[#allocation0]]
  $region65: #{tpu_custom_call.1} parent=0
    _
  %s7 = ssub.s32 1, %s5
  %s8 = scalar_select 0, %s7, %s5
  $region1: #{tpu_custom_call.1} parent=0
    #allocation4 [shape = 'u8[4096]{0}', space=vmem, size = 0x1000, scoped, tag = 'input window, operand 0']
    #allocation5 [shape = 's32[2]{0}', space=sflag, size = 0x8, scoped, tag = 'scoped memory for tpu_custom_call.1']
    #allocation6 [shape = 'u8[1024]{0}', space=vmem, size = 0x400, scoped, tag = 'input window, operand 1']
    #allocation7 [shape = 's32[2]{0}', space=sflag, size = 0x8, scoped, tag = 'scoped memory for tpu_custom_call.1']
    %9 = vsyncpa [#allocation5], 0
    %s10 = scalar_lea.sflag [#allocation5], 1
    %11 = vsyncpa %s10, 0
    %12 = vsyncpa [#allocation7], 0
    %s13 = scalar_lea.sflag [#allocation7], 1
    %14 = vsyncpa %s13, 0
    loop: start=0, step=1, limit=4
    $region2: #{tpu_custom_call.1} parent=1 // loop_pre_header
      _
    $region3: #{tpu_custom_call.1} parent=1 // loop_header
      %s16 = sphi 0, %s20
      %p17 = scmp.ge.s32.totalorder %s16, 4
      %s23 = sphi 0, %s35
      %s24 = sphi 0, %s31
      %s25 = sphi 0, %s23
      %s26 = sphi 0, %s24
      %s27 = sphi 0, %s25
      %s28 = sphi 0, %s26
      %s40 = sphi 0, %s42
      %s43 = sphi 0, %s40
      %s44 = sphi 0, %s43
      %s60 = sphi 0, %s44
      %s68 = sphi 0, %s70
      %s71 = sphi 0, %s68
      %s72 = sphi 0, %s71
      %s88 = sphi 0, %s72
      %s94 = sphi 0, %s96
      %s97 = sphi 0, %s94
      %s98 = sphi 0, %s97
      %s114 = sphi 0, %s98
      %s120 = sphi 0, %s122
      %s123 = sphi 0, %s120
      %s124 = sphi 0, %s123
      %s140 = sphi 0, %s124
    $region4: #{tpu_custom_call.1} parent=1 // loop_header_branch
      %19 = sbr.rel (%p17) target = $region8
    $region5: #{tpu_custom_call.1} parent=1 // loop_body
      %s21 = ssub.s32 %s16, 1
      %s22 = ssub.s32 %s16, 2
      %s29 = sadd.s32 1, %s24
      %p30 = scmp.ge.s32.totalorder %s29, 1
      %s31 = scalar_select %p30, 0, %s29
      %s32 = sadd.s32 1, %s23
      %s33 = scalar_select %p30, %s32, %s23
      %p34 = scmp.ge.s32.totalorder %s33, 2
      %s35 = scalar_select %p34, 0, %s33
      %s36 = sadd.s32 %s23, %s24
      %s37 = sadd.s32 %s35, %s31
      %s38 = ssub.s32 %s36, %s37
      %p39 = scmp.eq.s32.totalorder %s38, 0
      %s41 = sadd.s32 %s40, 1
      %s42 = scalar_select %p39, %s40, %s41
      %p45 = pneg %p39
      %p46 = scmp.eq.s32.totalorder %s16, 1
      %p47 = por %p45, %p46
      %p48 = scmp.ne.s32.totalorder %s40, %s43
      %p49 = scmp.eq.s32.totalorder %s16, 0
      %p50 = por %p48, %p49
      %p51 = scmp.ne.s32.totalorder %s40, %s43
      %p52 = scmp.eq.s32.totalorder %s21, 1
      %p53 = por %p51, %p52
      %p54 = scmp.ne.s32.totalorder %s43, %s44
      %p55 = scmp.eq.s32.totalorder %s21, 0
      %p56 = por %p54, %p55
      %p57 = scmp.ne.s32.totalorder %s43, %s44
      %p58 = scmp.eq.s32.totalorder %s22, 1
      %p59 = por %p57, %p58
      %p61 = scmp.ne.s32.totalorder %s44, %s60
      %p62 = scmp.eq.s32.totalorder %s22, 0
      %p63 = por %p61, %p62
      %s64 = sadd.s32 %s23, %s24
      %s65 = sadd.s32 %s35, %s31
      %s66 = ssub.s32 %s64, %s65
      %p67 = scmp.eq.s32.totalorder %s66, 0
      %s69 = sadd.s32 %s68, 1
      %s70 = scalar_select %p67, %s68, %s69
      %p73 = pneg %p67
      %p74 = scmp.eq.s32.totalorder %s16, 1
      %p75 = por %p73, %p74
      %p76 = scmp.ne.s32.totalorder %s68, %s71
      %p77 = scmp.eq.s32.totalorder %s16, 0
      %p78 = por %p76, %p77
      %p79 = scmp.ne.s32.totalorder %s68, %s71
      %p80 = scmp.eq.s32.totalorder %s21, 1
      %p81 = por %p79, %p80
      %p82 = scmp.ne.s32.totalorder %s71, %s72
      %p83 = scmp.eq.s32.totalorder %s21, 0
      %p84 = por %p82, %p83
      %p85 = scmp.ne.s32.totalorder %s71, %s72
      %p86 = scmp.eq.s32.totalorder %s22, 1
      %p87 = por %p85, %p86
      %p89 = scmp.ne.s32.totalorder %s72, %s88
      %p90 = scmp.eq.s32.totalorder %s22, 0
      %p91 = por %p89, %p90
      %s92 = ssub.s32 %s23, %s35
      %p93 = scmp.eq.s32.totalorder %s92, 0
      %s95 = sadd.s32 %s94, 1
      %s96 = scalar_select %p93, %s94, %s95
      %p99 = pneg %p93
      %p100 = scmp.eq.s32.totalorder %s16, 1
      %p101 = por %p99, %p100
      %p102 = scmp.ne.s32.totalorder %s94, %s97
      %p103 = scmp.eq.s32.totalorder %s16, 0
      %p104 = por %p102, %p103
      %p105 = scmp.ne.s32.totalorder %s94, %s97
      %p106 = scmp.eq.s32.totalorder %s21, 1
      %p107 = por %p105, %p106
      %p108 = scmp.ne.s32.totalorder %s97, %s98
      %p109 = scmp.eq.s32.totalorder %s21, 0
      %p110 = por %p108, %p109
      %p111 = scmp.ne.s32.totalorder %s97, %s98
      %p112 = scmp.eq.s32.totalorder %s22, 1
      %p113 = por %p111, %p112
      %p115 = scmp.ne.s32.totalorder %s98, %s114
      %p116 = scmp.eq.s32.totalorder %s22, 0
      %p117 = por %p115, %p116
      %s118 = ssub.s32 %s23, %s35
      %p119 = scmp.eq.s32.totalorder %s118, 0
      %s121 = sadd.s32 %s120, 1
      %s122 = scalar_select %p119, %s120, %s121
      %p125 = pneg %p119
      %p126 = scmp.eq.s32.totalorder %s16, 1
      %p127 = por %p125, %p126
      %p128 = scmp.ne.s32.totalorder %s120, %s123
      %p129 = scmp.eq.s32.totalorder %s16, 0
      %p130 = por %p128, %p129
      %p131 = scmp.ne.s32.totalorder %s120, %s123
      %p132 = scmp.eq.s32.totalorder %s21, 1
      %p133 = por %p131, %p132
      %p134 = scmp.ne.s32.totalorder %s123, %s124
      %p135 = scmp.eq.s32.totalorder %s21, 0
      %p136 = por %p134, %p135
      %p137 = scmp.ne.s32.totalorder %s123, %s124
      %p138 = scmp.eq.s32.totalorder %s22, 1
      %p139 = por %p137, %p138
      %p141 = scmp.ne.s32.totalorder %s124, %s140
      %p142 = scmp.eq.s32.totalorder %s22, 0
      %p143 = por %p141, %p142
      %p144 = scmp.le.s32.totalorder 1, %s16
      %p145 = scmp.lt.s32.totalorder %s16, 3
      %p146 = pnand %p144, %p145
      %p147 = pneg %p146
      // Predicated region
      $region9: #{tpu_custom_call.1} parent=5 // pred_check
        _
      $region10: #{tpu_custom_call.1} parent=5 // pred_check_branch
        %149 = sbr.rel (%p146) target = $region12
      $region11: #{tpu_custom_call.1} parent=5 // pred_region
        %s150 = ssub.s32 %s16, 1
      $region12: #{tpu_custom_call.1} parent=5 // pred_fallthru
        _
      %p151 = scmp.lt.s32.totalorder %s16, 2
      // Predicated region
      $region13: #{tpu_custom_call.1} parent=5 // pred_check
        %p152 = pneg %p151
      $region14: #{tpu_custom_call.1} parent=5 // pred_check_branch
        %154 = sbr.rel (%p152) target = $region16
      $region15: #{tpu_custom_call.1} parent=5 // pred_region
        // Predicated region
        $region17: #{tpu_custom_call.1} parent=15 // pred_check
          %p155 = pneg %p50
        $region18: #{tpu_custom_call.1} parent=15 // pred_check_branch
          %157 = sbr.rel (%p155) target = $region20
        $region19: #{tpu_custom_call.1} parent=15 // pred_region
          %s158 = sand.u32 %s40, 1
          %s159 = scalar_lea.sflag [#allocation5], %s158
          %s160 = sand.u32 %s40, 1
          %s161 = smul.addr %s160, 4
          %s162 = scalar_lea.vmem [#allocation4], %s161
          %s163 = sadd.s32 %s23, %s24
          %165 = vsyncadd %s159, 0
          %s166 = smul.addr %s163, 4
          %s167 = scalar_lea.hbm %s0, %s166
          %s169 = sshll.u32 %s167, 4
          %s170 = int_to_ptr.hbm [resolvable:$true] %s169
          %s171 = sshll.u32 %s162, 4
          %s172 = int_to_ptr.vmem [resolvable:$true] %s171
          %174 = dma.hbm_to_vmem [thread:$0]  %s170, 64, %s172, %s159
        $region20: #{tpu_custom_call.1} parent=15 // pred_fallthru
          _
        // Predicated region
        $region21: #{tpu_custom_call.1} parent=15 // pred_check
          %p175 = pneg %p78
        $region22: #{tpu_custom_call.1} parent=15 // pred_check_branch
          %177 = sbr.rel (%p175) target = $region24
        $region23: #{tpu_custom_call.1} parent=15 // pred_region
          %s178 = sand.u32 %s68, 1
          %s179 = scalar_lea.sflag [#allocation7], %s178
          %s180 = sand.u32 %s68, 1
          %s181 = scalar_lea.vmem [#allocation6], %s180
          %s182 = sadd.s32 %s23, %s24
          %184 = vsyncadd %s179, 0
          %s185 = scalar_lea.hbm %s1, %s182
          %s187 = sshll.u32 %s185, 4
          %s188 = int_to_ptr.hbm [resolvable:$true] %s187
          %s189 = sshll.u32 %s181, 4
          %s190 = int_to_ptr.vmem [resolvable:$true] %s189
          %192 = dma.hbm_to_vmem [thread:$0]  %s188, 16, %s190, %s179
        $region24: #{tpu_custom_call.1} parent=15 // pred_fallthru
          _
      $region16: #{tpu_custom_call.1} parent=5 // pred_fallthru
        _
      %p193 = scmp.le.s32.totalorder 1, %s16
      %p194 = scmp.lt.s32.totalorder %s16, 3
      %p195 = pnand %p193, %p194
      %p196 = pneg %p195
      // Predicated region
      $region25: #{tpu_custom_call.1} parent=5 // pred_check
        _
      $region26: #{tpu_custom_call.1} parent=5 // pred_check_branch
        %198 = sbr.rel (%p195) target = $region28
      $region27: #{tpu_custom_call.1} parent=5 // pred_region
        %s199 = ssub.s32 %s16, 1
        %s200 = sand.u32 %s43, 1
        %s201 = scalar_lea.sflag [#allocation5], %s200
        %s202 = sand.u32 %s43, 1
        %s203 = smul.addr %s202, 4
        %s204 = scalar_lea.vmem [#allocation4], %s203
        // Predicated region
        $region29: #{tpu_custom_call.1} parent=27 // pred_check
          %p205 = pneg %p56
        $region30: #{tpu_custom_call.1} parent=27 // pred_check_branch
          %207 = sbr.rel (%p205) target = $region32
        $region31: #{tpu_custom_call.1} parent=27 // pred_region
          %209 = dma.done %s201, 64
        $region32: #{tpu_custom_call.1} parent=27 // pred_fallthru
          _
        %s210 = sand.u32 %s71, 1
        %s211 = scalar_lea.sflag [#allocation7], %s210
        %s212 = sand.u32 %s71, 1
        %s213 = scalar_lea.vmem [#allocation6], %s212
        // Predicated region
        $region33: #{tpu_custom_call.1} parent=27 // pred_check
          %p214 = pneg %p84
        $region34: #{tpu_custom_call.1} parent=27 // pred_check_branch
          %216 = sbr.rel (%p214) target = $region36
        $region35: #{tpu_custom_call.1} parent=27 // pred_region
          %218 = dma.done %s211, 16
        $region36: #{tpu_custom_call.1} parent=27 // pred_fallthru
          _
        %s219 = sand.u32 %s43, 1
        %s220 = scalar_lea.sflag [#allocation5], %s219
        %s221 = sand.u32 %s43, 1
        %s222 = smul.addr %s221, 4
        %s223 = scalar_lea.vmem [#allocation4], %s222
        %p224 = pneg %p56
        %p225 = pneg %p53
        %s226 = sand.u32 %s71, 1
        %s227 = scalar_lea.sflag [#allocation7], %s226
        %s228 = sand.u32 %s71, 1
        %s229 = scalar_lea.vmem [#allocation6], %s228
        %p230 = pneg %p84
        %p231 = pneg %p81
        %p232 = pneg %p110
        %p233 = pneg %p107
        %p234 = scmp.lt.s32.totalorder %s25, 1
        %s235 = scalar_select %p234, %s25, 1
        %s236 = smul.addr %s235, 4
        %s237 = scalar_lea.vmem %s2, %s236
        %p238 = pneg %p136
        %p239 = pneg %p133
        %p240 = scmp.lt.s32.totalorder %s25, 1
        %s241 = scalar_select %p240, %s25, 1
        %s242 = smul.addr %s241, 4
        %s243 = scalar_lea.vmem %s3, %s242
        %s244 = sadd.s32 %s25, %s26
        %s245 = sadd.s32 %s25, %s26
        %p246 = scmp.lt.s32.totalorder %s25, 1
        %s247 = scalar_select %p246, %s25, 1
        %s248 = smul.addr %s247, 4
        %s249 = scalar_lea.vmem %s2, %s248
        %p250 = scmp.lt.s32.totalorder %s25, 1
        %s251 = scalar_select %p250, %s25, 1
        %s252 = smul.addr %s251, 4
        %s253 = scalar_lea.vmem %s3, %s252
        %p254 = scmp.eq.s32.totalorder %s26, 0
        // Predicated region
        $region37: #{tpu_custom_call.1} parent=27 // pred_check
          %p255 = pneg %p254
        $region38: #{tpu_custom_call.1} parent=27 // pred_check_branch
          %257 = sbr.rel (%p255) target = $region40
        $region39: #{tpu_custom_call.1} parent=27 // pred_region
          %vm258 = vcmask 3072
          %259 = vst.msk [vmem:[#allocation2] sm:$0xf] %vm258, 0.0
          %260 = vst.msk [vmem:[#allocation3] sm:$0xf] %vm258, 0.0
        $region40: #{tpu_custom_call.1} parent=27 // pred_fallthru
          _
        %s261 = sadd.s32 %s25, %s26
        %s262 = smul.u32 %s261, 128
        %v263 = vld [vmem:[%s204] sm:$0xf]
        %v264 = vld [vmem:[%s213] sm:$0x1]
        %v265 = vunpack.c.0.s8 %v264
        %vm266 = vcmask 1043456
        %v267 = vsel %vm266, %v263, -inf
        %v268 = vrot.slane %v267, 4
        %v269 = vmax.f32 %v267, %v268
        %v270 = vrot.slane %v269, 2
        %v271 = vmax.f32 %v269, %v270
        %v272 = vrot.slane %v271, 1
        %v273 = vmax.f32 %v271, %v272
        %v274 = vsub.f32 %v263, %v273
        %v275 = vmul.f32 %v274, 1.442695
        %v276 = vpow.pop %v275
        %v277 = vsel %vm266, %v276, 0.0
        %v278 = vrot.slane %v277, 4
        %v279 = vadd.f32 %v277, %v278
        %v280 = vrot.slane %v279, 2
        %v281 = vadd.f32 %v279, %v280
        %v282 = vrot.slane %v281, 1
        %v283 = vadd.f32 %v281, %v282
        %v284 = vrcp.pop %v283
        %v285 = vmul.f32 %v276, %v284
        %v286 = vlaneseq
        %v287 = vshrl.u32 %v286, 7
        %v288 = vperm.slane %v265, 0
        %vm289 = vcmp.eq.s32.totalorder %v287, %v288
        %v290 = vlaneseq
        %v291 = vand.u32 %v290, 127
        %s292 = sadd.s32 %s262, 0
        %v293 = vstv %s292
        %v294 = vadd.s32 %v291, %v293
        %vm295 = vcmp.lt.s32.totalorder %v294, 200
        %v296 = vsel %vm295, 1, 0
        %vm297 = vcmp.eq.s32.totalorder %v296, 1
        %v298 = vsel %vm297, %v285, 0.0
        %vm299 = vmand %vm289, %vm297
        %v300 = vsel %vm299, 1, 0
        %v301 = vcvt.s32.f32 %v300
        %v302 = vmul.f32 %v298, %v301
        %v303 = vsel %vm266, %v302, 0.0
        %304 = vadd.xlane.f32.xlu0 %v303
        %v305 = vpop.xlane.xlu0 %304
        %v306 = vadd.f32 %v305, 0.0
        %v307 = vadd.f32 %v298, %v301
        %v308 = vsel %vm266, %v307, 0.0
        %309 = vadd.xlane.f32.xlu0 %v308
        %v310 = vpop.xlane.xlu0 %309
        %v311 = vadd.f32 %v310, 0.0
        %v312 = vld [vmem:[#allocation2] sm:$0xf]
        %v313 = vadd.f32 %v312, %v306
        %vm314 = vcmask 3072
        %315 = vst.msk [vmem:[#allocation2] sm:$0xf] %vm314, %v313
        %v316 = vld [vmem:[#allocation3] sm:$0xf]
        %v317 = vadd.f32 %v316, %v311
        %318 = vst.msk [vmem:[#allocation3] sm:$0xf] %vm314, %v317
        // Predicated region
        $region41: #{tpu_custom_call.1} parent=27 // pred_check
          %p319 = pneg %p254
        $region42: #{tpu_custom_call.1} parent=27 // pred_check_branch
          %321 = sbr.rel (%p319) target = $region44
        $region43: #{tpu_custom_call.1} parent=27 // pred_region
          %v322 = vld [vmem:[#allocation2] sm:$0xf]
          %323 = vst.msk [vmem:[%s249] sm:$0xf] %vm314, %v322
          %v324 = vld [vmem:[#allocation3] sm:$0xf]
          %325 = vst.msk [vmem:[%s253] sm:$0xf] %vm314, %v324
        $region44: #{tpu_custom_call.1} parent=27 // pred_fallthru
          _
        %p326 = scmp.lt.s32.totalorder %s25, 1
        %s327 = scalar_select %p326, %s25, 1
        %s328 = smul.addr %s327, 4
        %s329 = scalar_lea.vmem %s2, %s328
        %p330 = scmp.lt.s32.totalorder %s25, 1
        %s331 = scalar_select %p330, %s25, 1
        %s332 = smul.addr %s331, 4
        %s333 = scalar_lea.vmem %s3, %s332
        // Predicated region
        $region45: #{tpu_custom_call.1} parent=27 // pred_check
          %p334 = pneg %p107
        $region46: #{tpu_custom_call.1} parent=27 // pred_check_branch
          %336 = sbr.rel (%p334) target = $region48
        $region47: #{tpu_custom_call.1} parent=27 // pred_region
          _
        $region48: #{tpu_custom_call.1} parent=27 // pred_fallthru
          _
        // Predicated region
        $region49: #{tpu_custom_call.1} parent=27 // pred_check
          %p337 = pneg %p133
        $region50: #{tpu_custom_call.1} parent=27 // pred_check_branch
          %339 = sbr.rel (%p337) target = $region52
        $region51: #{tpu_custom_call.1} parent=27 // pred_region
          _
        $region52: #{tpu_custom_call.1} parent=27 // pred_fallthru
          _
      $region28: #{tpu_custom_call.1} parent=5 // pred_fallthru
        _
      %p340 = scmp.le.s32.totalorder 2, %s16
      // Predicated region
      $region53: #{tpu_custom_call.1} parent=5 // pred_check
        %p341 = pneg %p340
      $region54: #{tpu_custom_call.1} parent=5 // pred_check_branch
        %343 = sbr.rel (%p341) target = $region56
      $region55: #{tpu_custom_call.1} parent=5 // pred_region
        %s344 = ssub.s32 %s16, 2
        // Predicated region
        $region57: #{tpu_custom_call.1} parent=55 // pred_check
          %p345 = pneg %p113
        $region58: #{tpu_custom_call.1} parent=55 // pred_check_branch
          %347 = sbr.rel (%p345) target = $region60
        $region59: #{tpu_custom_call.1} parent=55 // pred_region
          %p348 = scmp.lt.s32.totalorder %s27, 1
          %s349 = scalar_select %p348, %s27, 1
          %s350 = smul.addr %s349, 4
          %s351 = scalar_lea.vmem %s2, %s350
        $region60: #{tpu_custom_call.1} parent=55 // pred_fallthru
          _
        // Predicated region
        $region61: #{tpu_custom_call.1} parent=55 // pred_check
          %p352 = pneg %p139
        $region62: #{tpu_custom_call.1} parent=55 // pred_check_branch
          %354 = sbr.rel (%p352) target = $region64
        $region63: #{tpu_custom_call.1} parent=55 // pred_region
          %p355 = scmp.lt.s32.totalorder %s27, 1
          %s356 = scalar_select %p355, %s27, 1
          %s357 = smul.addr %s356, 4
          %s358 = scalar_lea.vmem %s3, %s357
        $region64: #{tpu_custom_call.1} parent=55 // pred_fallthru
          _
      $region56: #{tpu_custom_call.1} parent=5 // pred_fallthru
        _
    $region6: #{tpu_custom_call.1} parent=1 // loop_footer
      %s20 = sadd.s32 1, %s16
    $region7: #{tpu_custom_call.1} parent=1 // loop_footer_branch
      %15 = sbr.rel target = $region3
    $region8: #{tpu_custom_call.1} parent=1 // loop_exit
      _
    %359 = vsyncpa [#allocation5], 1
    %s360 = scalar_lea.sflag [#allocation5], 1
    %361 = vsyncpa %s360, 1
    %362 = vsyncpa [#allocation7], 1
    %s363 = scalar_lea.sflag [#allocation7], 1
    %364 = vsyncpa %s363, 1

</llo_original>
